<compile_context>
chip_gen: v7x
topology: tpu7x:2x2x1
jax: 0.10.0
libtpu: 0.0.40
codegen_flags: <defaults>
</compile_context>

<pallas_src>
import functools

import jax
import jax.numpy as jnp
from jax.experimental import pallas as pl
from jax.experimental.pallas import tpu as pltpu

LANE = 128
SUBLANE = 8


def _round_up(x, m):
    return ((x + m - 1) // m) * m


def _dice_partial_kernel(pred_ref, target_ref, inter_ref, tot_ref,
                         inter_acc, tot_acc, *, hw, steps_per_part, tile):
    p = pl.program_id(1)
    k = pl.program_id(2)

    @pl.when(k == 0)
    def _():
        inter_acc[...] = jnp.zeros_like(inter_acc)
        tot_acc[...] = jnp.zeros_like(tot_acc)

    # Global (unclamped) column offset of this step.  The index_map clamps the
    # DMA source block, so lanes past `hw` carry unspecified data; zero them
    # before reducing.  Fully-out-of-range padding steps mask to all-zero.
    col0 = (p * steps_per_part + k) * tile
    lane = jax.lax.broadcasted_iota(jnp.int32, (1, tile), 1)
    valid = (col0 + lane) < hw                      # (1, tile) -> bcast over rows

    pv = jnp.where(valid, pred_ref[...].astype(jnp.float32), 0.0)
    tv = jnp.where(valid, target_ref[...].astype(jnp.float32), 0.0)

    # Two lane-axis reductions per step (intersection and pred+target sum).
    inter_acc[...] += jnp.sum(pv * tv, axis=1, keepdims=True)
    tot_acc[...] += jnp.sum(pv + tv, axis=1, keepdims=True)

    @pl.when(k == pl.num_programs(2) - 1)
    def _():
        inter_ref[0] = inter_acc[...]
        tot_ref[0] = tot_acc[...]


def dice_loss(pred, target, smooth=1.0):
    """pred, target: (N, C, H, W) arrays (any float/bool/int dtype).

    Returns the scalar float32 dice loss matching the PyTorch module.
    """
    assert pred.shape == target.shape and pred.ndim == 4
    n, c, h, w = pred.shape
    nc, hw = n * c, h * w

    pred2d = pred.reshape(nc, hw)        # native dtype: no upcast, no pad copy
    target2d = target.reshape(nc, hw)

    # ---- generation-aware VMEM budgeting ---------------------------------
    try:
        vmem_cap = int(pltpu.get_tpu_info().vmem_capacity_bytes)
    except Exception:
        vmem_cap = 64 << 20              # conservative fallback (v7x per-core)
    vmem_limit = min(int(vmem_cap * 0.7), vmem_cap - (8 << 20))
    input_budget = vmem_cap // 3         # headroom for pipeline + temporaries

    itemsize = max(jnp.dtype(pred2d.dtype).itemsize,
                   jnp.dtype(target2d.dtype).itemsize)
    # Per (row, lane) element of a live block:
    #   2 inputs x 2 pipeline buffers x native itemsize  (streamed tiles)
    # + ~4 f32 temporaries materialized in the body      (casts / products).
    bytes_per_elem = 2 * 2 * itemsize + 4 * 4

    # ---- row blocking (only when NC alone would blow the budget) ---------
    if nc * LANE * bytes_per_elem <= input_budget:
        tr, nr = nc, 1                   # full first dim: exempt from (8,128)
    else:
        tr = max(SUBLANE,
                 (input_budget // (LANE * bytes_per_elem)) // SUBLANE * SUBLANE)
        nr = pl.cdiv(nc, tr)             # last row block ragged; rows sliced off
    nc_out = nr * tr

    # ---- spatial tiling: largest 128-multiple within the budget ----------
    tile = input_budget // (tr * bytes_per_elem)
    tile = max(LANE, (tile // LANE) * LANE)
    tile = min(tile, _round_up(hw, LANE))

    nk_total = pl.cdiv(hw, tile)         # ragged last block masked in-kernel
    nparts = 2 if nk_total >= 2 else 1   # feed both v7x TensorCores
    steps = pl.cdiv(nk_total, nparts)

    def in_map(r, p, k):
        # Clamp so the padding steps of an uneven partition re-read the last
        # real block (their contribution is masked to zero in the kernel).
        return (r, jnp.minimum(p * steps + k, nk_total - 1))

    def out_map(r, p, k):
        return (p, r, 0)

    kernel = functools.partial(_dice_partial_kernel,
                               hw=hw, steps_per_part=steps, tile=tile)

    inter_p, tot_p = pl.pallas_call(
        kernel,
        out_shape=(jax.ShapeDtypeStruct((nparts, nc_out, 1), jnp.float32),
                   jax.ShapeDtypeStruct((nparts, nc_out, 1), jnp.float32)),
        grid_spec=pltpu.PrefetchScalarGridSpec(
            num_scalar_prefetch=0,
            grid=(nr, nparts, steps),
            in_specs=[
                pl.BlockSpec((tr, tile), in_map),
                pl.BlockSpec((tr, tile), in_map),
            ],
            out_specs=[
                pl.BlockSpec((1, tr, 1), out_map),
                pl.BlockSpec((1, tr, 1), out_map),
            ],
            scratch_shapes=[
                pltpu.VMEM((tr, 1), jnp.float32),   # intersection accumulator
                pltpu.VMEM((tr, 1), jnp.float32),   # pred+target sum accumulator
            ],
        ),
        compiler_params=pltpu.CompilerParams(
            dimension_semantics=("parallel", "parallel", "arbitrary"),
            vmem_limit_bytes=vmem_limit,
        ),
    )(pred2d, target2d)

    # Tiny epilogue: combine partitions, drop ragged rows, dice formula, mean.
    inter = jnp.sum(inter_p[:, :nc, 0], axis=0)     # (nc,)
    tot = jnp.sum(tot_p[:, :nc, 0], axis=0)         # (nc,)
    loss = 1.0 - (2.0 * inter + smooth) / (tot + smooth)
    return jnp.mean(loss)


def _dice_loss_ref(pred, target, smooth=1.0):
    # Pure-JAX reference mirroring the PyTorch module.
    pred = pred.astype(jnp.float32)
    target = target.astype(jnp.float32)
    intersection = (pred * target).sum(axis=2).sum(axis=2)
    loss = 1.0 - (2.0 * intersection + smooth) / (
        pred.sum(axis=2).sum(axis=2) + target.sum(axis=2).sum(axis=2) + smooth
    )
    return loss.mean()


if __name__ == "__main__":
    key = jax.random.PRNGKey(0)
    k1, k2 = jax.random.split(key)

    N, C, H, W = 2, 4, 16, 16
    # pred: sigmoid-like probabilities, target: binary mask.
    pred = jax.nn.sigmoid(jax.random.normal(k1, (N, C, H, W), dtype=jnp.float32))
    target = (jax.random.uniform(k2, (N, C, H, W)) > 0.5).astype(jnp.float32)

    out = dice_loss(pred, target, smooth=1.0)
    out = jax.block_until_ready(out)

    ref = _dice_loss_ref(pred, target, smooth=1.0)
    assert jnp.allclose(out, ref, atol=1e-5, rtol=1e-5), (out, ref)

    print("KERNEL_OK")
</pallas_src>

<mosaic_0001>
module attributes {stable_mosaic.version = 11 : i64} {
  func.func @_dice_partial_kernel(%arg0: i32, %arg1: i32, %arg2: i32, %arg3: memref<8x256xf32, #tpu.memory_space<vmem>>, %arg4: memref<8x256xf32, #tpu.memory_space<vmem>>, %arg5: memref<1x8x1xf32, #tpu.memory_space<vmem>>, %arg6: memref<1x8x1xf32, #tpu.memory_space<vmem>>, %arg7: memref<8x1xf32, #tpu.memory_space<vmem>>, %arg8: memref<8x1xf32, #tpu.memory_space<vmem>>) attributes {dimension_semantics = [#tpu.dimension_semantics<parallel>, #tpu.dimension_semantics<parallel>, #tpu.dimension_semantics<arbitrary>], iteration_bounds = array<i64: 1, 1, 1>, scalar_prefetch = 0 : i64, scratch_operands = 2 : i64, tpu.core_type = #tpu.core_type<tc>, window_params = [{transform_indices = @transform_0, window_bounds = array<i64: 8, 256>}, {transform_indices = @transform_1, window_bounds = array<i64: 8, 256>}, {transform_indices = @transform_2, window_bounds = array<i64: 1, 8, 1>}, {transform_indices = @transform_3, window_bounds = array<i64: 1, 8, 1>}]} {
    %c0_i32 = arith.constant 0 : i32
    %0 = arith.cmpi eq, %arg2, %c0_i32 : i32
    %1 = arith.extui %0 : i1 to i32
    %c0_i32_0 = arith.constant 0 : i32
    %2 = arith.cmpi ne, %1, %c0_i32_0 : i32
    scf.if %2 {
      %cst_18 = arith.constant 0.000000e+00 : f32
      %36 = vector.broadcast %cst_18 : f32 to vector<8x1xf32>
      %c0_19 = arith.constant 0 : index
      %c0_20 = arith.constant 0 : index
      %37 = vector.load %arg7[%c0_19, %c0_20] : memref<8x1xf32, #tpu.memory_space<vmem>>, vector<8x1xf32>
      tpu.vector_store %arg7[%c0_19, %c0_20], %36 {strides = array<i32>} : memref<8x1xf32, #tpu.memory_space<vmem>>, vector<8x1xf32>,
      %cst_21 = arith.constant 0.000000e+00 : f32
      %38 = vector.broadcast %cst_21 : f32 to vector<8x1xf32>
      %c0_22 = arith.constant 0 : index
      %c0_23 = arith.constant 0 : index
      %39 = vector.load %arg8[%c0_22, %c0_23] : memref<8x1xf32, #tpu.memory_space<vmem>>, vector<8x1xf32>
      tpu.vector_store %arg8[%c0_22, %c0_23], %38 {strides = array<i32>} : memref<8x1xf32, #tpu.memory_space<vmem>>, vector<8x1xf32>,
    } else {
    }
    %c1_i32 = arith.constant 1 : i32
    %3 = arith.muli %arg1, %c1_i32 : i32
    %4 = arith.addi %3, %arg2 : i32
    %c256_i32 = arith.constant 256 : i32
    %5 = arith.muli %4, %c256_i32 : i32
    %6 = tpu.iota {dimensions = array<i32: 1>} : vector<1x256xi32>
    %7 = vector.broadcast %5 : i32 to vector<1x256xi32>
    %8 = arith.addi %7, %6 : vector<1x256xi32>
    %c256_i32_1 = arith.constant 256 : i32
    %9 = vector.broadcast %c256_i32_1 : i32 to vector<1x256xi32>
    %10 = arith.cmpi slt, %8, %9 : vector<1x256xi32>
    %c0 = arith.constant 0 : index
    %c0_2 = arith.constant 0 : index
    %11 = vector.load %arg3[%c0, %c0_2] : memref<8x256xf32, #tpu.memory_space<vmem>>, vector<8x256xf32>
    %cst = arith.constant 0.000000e+00 : f32
    %12 = vector.shape_cast %10 : vector<1x256xi1> to vector<1x256xi1>
    %13 = vector.broadcast %12 : vector<1x256xi1> to vector<8x256xi1>
    %14 = vector.broadcast %cst : f32 to vector<8x256xf32>
    %15 = arith.select %13, %11, %14 : vector<8x256xi1>, vector<8x256xf32>
    %c0_3 = arith.constant 0 : index
    %c0_4 = arith.constant 0 : index
    %16 = vector.load %arg4[%c0_3, %c0_4] : memref<8x256xf32, #tpu.memory_space<vmem>>, vector<8x256xf32>
    %cst_5 = arith.constant 0.000000e+00 : f32
    %17 = vector.shape_cast %10 : vector<1x256xi1> to vector<1x256xi1>
    %18 = vector.broadcast %17 : vector<1x256xi1> to vector<8x256xi1>
    %19 = vector.broadcast %cst_5 : f32 to vector<8x256xf32>
    %20 = arith.select %18, %16, %19 : vector<8x256xi1>, vector<8x256xf32>
    %c0_6 = arith.constant 0 : index
    %c0_7 = arith.constant 0 : index
    %21 = vector.load %arg7[%c0_6, %c0_7] : memref<8x1xf32, #tpu.memory_space<vmem>>, vector<8x1xf32>
    %22 = arith.mulf %15, %20 : vector<8x256xf32>
    %cst_8 = arith.constant dense<0.000000e+00> : vector<8xf32>
    %23 = vector.multi_reduction <add>, %22, %cst_8 [1] : vector<8x256xf32> to vector<8xf32>
    %24 = vector.shape_cast %23 : vector<8xf32> to vector<8x1xf32>
    %25 = arith.addf %21, %24 : vector<8x1xf32>
    %c0_9 = arith.constant 0 : index
    %c0_10 = arith.constant 0 : index
    %26 = vector.load %arg7[%c0_9, %c0_10] : memref<8x1xf32, #tpu.memory_space<vmem>>, vector<8x1xf32>
    tpu.vector_store %arg7[%c0_9, %c0_10], %25 {strides = array<i32>} : memref<8x1xf32, #tpu.memory_space<vmem>>, vector<8x1xf32>,
    %c0_11 = arith.constant 0 : index
    %c0_12 = arith.constant 0 : index
    %27 = vector.load %arg8[%c0_11, %c0_12] : memref<8x1xf32, #tpu.memory_space<vmem>>, vector<8x1xf32>
    %28 = arith.addf %15, %20 : vector<8x256xf32>
    %cst_13 = arith.constant dense<0.000000e+00> : vector<8xf32>
    %29 = vector.multi_reduction <add>, %28, %cst_13 [1] : vector<8x256xf32> to vector<8xf32>
    %30 = vector.shape_cast %29 : vector<8xf32> to vector<8x1xf32>
    %31 = arith.addf %27, %30 : vector<8x1xf32>
    %c0_14 = arith.constant 0 : index
    %c0_15 = arith.constant 0 : index
    %32 = vector.load %arg8[%c0_14, %c0_15] : memref<8x1xf32, #tpu.memory_space<vmem>>, vector<8x1xf32>
    tpu.vector_store %arg8[%c0_14, %c0_15], %31 {strides = array<i32>} : memref<8x1xf32, #tpu.memory_space<vmem>>, vector<8x1xf32>,
    %c0_i32_16 = arith.constant 0 : i32
    %33 = arith.cmpi eq, %arg2, %c0_i32_16 : i32
    %34 = arith.extui %33 : i1 to i32
    %c0_i32_17 = arith.constant 0 : i32
    %35 = arith.cmpi ne, %34, %c0_i32_17 : i32
    scf.if %35 {
      %c0_18 = arith.constant 0 : index
      %c0_19 = arith.constant 0 : index
      %36 = vector.load %arg7[%c0_18, %c0_19] : memref<8x1xf32, #tpu.memory_space<vmem>>, vector<8x1xf32>
      %c0_20 = arith.constant 0 : index
      %c0_21 = arith.constant 0 : index
      %c0_22 = arith.constant 0 : index
      %37 = vector.load %arg5[%c0_20, %c0_21, %c0_22] : memref<1x8x1xf32, #tpu.memory_space<vmem>>, vector<1x8x1xf32>
      %38 = vector.shape_cast %37 : vector<1x8x1xf32> to vector<8x1xf32>
      %39 = vector.shape_cast %36 : vector<8x1xf32> to vector<1x8x1xf32>
      tpu.vector_store %arg5[%c0_20, %c0_21, %c0_22], %39 {strides = array<i32>} : memref<1x8x1xf32, #tpu.memory_space<vmem>>, vector<1x8x1xf32>,
      %c0_23 = arith.constant 0 : index
      %c0_24 = arith.constant 0 : index
      %40 = vector.load %arg8[%c0_23, %c0_24] : memref<8x1xf32, #tpu.memory_space<vmem>>, vector<8x1xf32>
      %c0_25 = arith.constant 0 : index
      %c0_26 = arith.constant 0 : index
      %c0_27 = arith.constant 0 : index
      %41 = vector.load %arg6[%c0_25, %c0_26, %c0_27] : memref<1x8x1xf32, #tpu.memory_space<vmem>>, vector<1x8x1xf32>
      %42 = vector.shape_cast %41 : vector<1x8x1xf32> to vector<8x1xf32>
      %43 = vector.shape_cast %40 : vector<8x1xf32> to vector<1x8x1xf32>
      tpu.vector_store %arg6[%c0_25, %c0_26, %c0_27], %43 {strides = array<i32>} : memref<1x8x1xf32, #tpu.memory_space<vmem>>, vector<1x8x1xf32>,
    } else {
    }
    return
  }
  func.func @transform_0(%arg0: i32, %arg1: i32, %arg2: i32) -> (i32, i32) {
    %c1_i32 = arith.constant 1 : i32
    %0 = arith.muli %arg1, %c1_i32 : i32
    %1 = arith.addi %0, %arg2 : i32
    %c0_i32 = arith.constant 0 : i32
    %2 = arith.minsi %1, %c0_i32 : i32
    %c0_i32_0 = arith.constant 0 : i32
    return %arg0, %2 : i32, i32
  }
  func.func @transform_1(%arg0: i32, %arg1: i32, %arg2: i32) -> (i32, i32) {
    %c1_i32 = arith.constant 1 : i32
    %0 = arith.muli %arg1, %c1_i32 : i32
    %1 = arith.addi %0, %arg2 : i32
    %c0_i32 = arith.constant 0 : i32
    %2 = arith.minsi %1, %c0_i32 : i32
    %c0_i32_0 = arith.constant 0 : i32
    return %arg0, %2 : i32, i32
  }
  func.func @transform_2(%arg0: i32, %arg1: i32, %arg2: i32) -> (i32, i32, i32) {
    %c0_i32 = arith.constant 0 : i32
    %c0_i32_0 = arith.constant 0 : i32
    return %arg1, %arg0, %c0_i32 : i32, i32, i32
  }
  func.func @transform_3(%arg0: i32, %arg1: i32, %arg2: i32) -> (i32, i32, i32) {
    %c0_i32 = arith.constant 0 : i32
    %c0_i32_0 = arith.constant 0 : i32
    return %arg1, %arg0, %c0_i32 : i32, i32, i32
  }
}

</mosaic_0001>

<llo_original>
// kernel: tpu_custom_call.1
$region0: #{tpu_custom_call.1}
  #allocation0 [shape = 'u32[]', space=smem, size = 0x4, offset = 0x4, fixed_abs, tag = 'smem constant byte address 0x4 - core index']
  #allocation1 [shape = 'u32[144,128]{1,0:T(1,128)}', space=vmem, size = 0x12000, scoped, tag = 'internal scratch']
  #allocation2 [shape = 'f32[8,1]{1,0:T(8,128)}', space=vmem, size = 0x1000, scoped, tag = 'scratch operand']
  #allocation3 [shape = 'f32[8,1]{1,0:T(8,128)}', space=vmem, size = 0x1000, scoped, tag = 'scratch operand']
  %s0 = inlined_call_operand.hbm [shape: f32[8,256], index: 0, kind: input, shape index: {}]
  %s1 = inlined_call_operand.hbm [shape: f32[8,256], index: 1, kind: input, shape index: {}]
  %s2 = inlined_call_operand.vmem [shape: f32[1,8,1], index: 2, kind: output, shape index: {0}]
  %s3 = inlined_call_operand.vmem [shape: f32[1,8,1], index: 3, kind: output, shape index: {1}]
  %4 = xla_tuple %s2, %s3
  %s5 = sld [smem:[#allocation0]]
  $region42: #{tpu_custom_call.1} parent=0
    _
  %s7 = ssub.s32 1, %s5
  %s8 = scalar_select 0, %s7, %s5
  $region1: #{tpu_custom_call.1} parent=0
    #allocation4 [shape = 'u8[8192]{0}', space=vmem, size = 0x2000, scoped, tag = 'input window, operand 0, single buffered']
    #allocation5 [shape = 's32[1]{0}', space=sflag, size = 0x4, scoped, tag = 'scoped memory for tpu_custom_call.1']
    #allocation6 [shape = 'u8[8192]{0}', space=vmem, size = 0x2000, scoped, tag = 'input window, operand 1, single buffered']
    #allocation7 [shape = 's32[1]{0}', space=sflag, size = 0x4, scoped, tag = 'scoped memory for tpu_custom_call.1']
    %9 = vsyncpa [#allocation5], 0
    %10 = vsyncpa [#allocation7], 0
    // Predicated region
    $region2: #{tpu_custom_call.1} parent=1 // pred_check
      _
    $region3: #{tpu_custom_call.1} parent=1 // pred_check_branch
      %12 = sbr.rel (0) target = $region5
    $region4: #{tpu_custom_call.1} parent=1 // pred_region
      %s13 = sadd.s32 0, 0
      %p14 = scmp.lt.s32.totalorder %s13, 0
      %s15 = scalar_select %p14, %s13, 0
      %s16 = smul.u32 2, %s15
      %s18 = ssub.s32 256, 256
      %19 = vsyncadd [#allocation5], %s18
      %s20 = smul.addr %s16, 128
      %s21 = scalar_lea.hbm %s0, %s20
      %s23 = sshll.u32 [#allocation4], 4
      %s24 = int_to_ptr.vmem [resolvable:$true] %s23
      %26 = dma.hbm_to_vmem [thread:$0]  %s21, 256, %s24, [#allocation5]
    $region5: #{tpu_custom_call.1} parent=1 // pred_fallthru
      _
    // Predicated region
    $region6: #{tpu_custom_call.1} parent=1 // pred_check
      _
    $region7: #{tpu_custom_call.1} parent=1 // pred_check_branch
      %28 = sbr.rel (0) target = $region9
    $region8: #{tpu_custom_call.1} parent=1 // pred_region
      %s29 = sadd.s32 0, 0
      %p30 = scmp.lt.s32.totalorder %s29, 0
      %s31 = scalar_select %p30, %s29, 0
      %s32 = smul.u32 2, %s31
      %s34 = ssub.s32 256, 256
      %35 = vsyncadd [#allocation7], %s34
      %s36 = smul.addr %s32, 128
      %s37 = scalar_lea.hbm %s1, %s36
      %s39 = sshll.u32 [#allocation6], 4
      %s40 = int_to_ptr.vmem [resolvable:$true] %s39
      %42 = dma.hbm_to_vmem [thread:$0]  %s37, 256, %s40, [#allocation7]
    $region9: #{tpu_custom_call.1} parent=1 // pred_fallthru
      _
    // Predicated region
    $region10: #{tpu_custom_call.1} parent=1 // pred_check
      _
    $region11: #{tpu_custom_call.1} parent=1 // pred_check_branch
      %44 = sbr.rel (0) target = $region13
    $region12: #{tpu_custom_call.1} parent=1 // pred_region
      %45 = dma.done [#allocation5], 256
    $region13: #{tpu_custom_call.1} parent=1 // pred_fallthru
      _
    // Predicated region
    $region14: #{tpu_custom_call.1} parent=1 // pred_check
      _
    $region15: #{tpu_custom_call.1} parent=1 // pred_check_branch
      %47 = sbr.rel (0) target = $region17
    $region16: #{tpu_custom_call.1} parent=1 // pred_region
      %48 = dma.done [#allocation7], 256
    $region17: #{tpu_custom_call.1} parent=1 // pred_fallthru
      _
    %s49 = sadd.s32 0, 0
    %p50 = scmp.lt.s32.totalorder %s49, 0
    %s51 = scalar_select %p50, %s49, 0
    %s52 = smul.u32 2, %s51
    %s53 = sadd.s32 0, 0
    %p54 = scmp.lt.s32.totalorder %s53, 0
    %s55 = scalar_select %p54, %s53, 0
    %s56 = smul.u32 2, %s55
    %p57 = scmp.eq.s32.totalorder 0, 0
    // Predicated region
    $region18: #{tpu_custom_call.1} parent=1 // pred_check
      %p58 = pneg %p57
    $region19: #{tpu_custom_call.1} parent=1 // pred_check_branch
      %60 = sbr.rel (%p58) target = $region21
    $region20: #{tpu_custom_call.1} parent=1 // pred_region
      %vm61 = vcmask 7168
      %62 = vst.msk [vmem:[#allocation2] sm:$0xff] %vm61, 0.0
      %63 = vst.msk [vmem:[#allocation3] sm:$0xff] %vm61, 0.0
    $region21: #{tpu_custom_call.1} parent=1 // pred_fallthru
      _
    %s64 = sadd.s32 0, 0
    %s65 = smul.u32 %s64, 256
    %v66 = vlaneseq
    %v67 = vand.u32 %v66, 127
    %v68 = vadd.s32 %v67, 128
    %v69 = vstv %s65
    %v70 = vadd.s32 %v69, %v67
    %v71 = vadd.s32 %v69, %v68
    %vm72 = vcmp.lt.s32.totalorder %v70, 256
    %vm73 = vcmp.lt.s32.totalorder %v71, 256
    %v74 = vld [vmem:[#allocation4] sm:$0xff]
    %v75 = vld [vmem:[#allocation4 + $0x8] sm:$0xff]
    %v76 = vsel %vm72, 1, 0
    %v77 = vsel %vm73, 1, 0
    %vm78 = vcmp.eq.s32.totalorder %v76, 1
    %vm79 = vcmp.eq.s32.totalorder %v77, 1
    %v80 = vsel %vm78, %v74, 0.0
    %v81 = vsel %vm79, %v75, 0.0
    %v82 = vld [vmem:[#allocation6] sm:$0xff]
    %v83 = vld [vmem:[#allocation6 + $0x8] sm:$0xff]
    %v84 = vsel %vm78, %v82, 0.0
    %v85 = vsel %vm79, %v83, 0.0
    %v86 = vld [vmem:[#allocation2] sm:$0xff]
    %v87 = vmul.f32 %v80, %v84
    %v88 = vmul.f32 %v81, %v85
    %v89 = vadd.f32 %v87, %v88
    %90 = vadd.xlane.f32.xlu0 %v89
    %v91 = vpop.xlane.xlu0 %90
    %v92 = vadd.f32 %v86, %v91
    %vm93 = vcmask 7168
    %94 = vst.msk [vmem:[#allocation2] sm:$0xff] %vm93, %v92
    %v95 = vld [vmem:[#allocation3] sm:$0xff]
    %v96 = vadd.f32 %v80, %v84
    %v97 = vadd.f32 %v81, %v85
    %v98 = vadd.f32 %v96, %v97
    %99 = vadd.xlane.f32.xlu0 %v98
    %v100 = vpop.xlane.xlu0 %99
    %v101 = vadd.f32 %v95, %v100
    %102 = vst.msk [vmem:[#allocation3] sm:$0xff] %vm93, %v101
    // Predicated region
    $region22: #{tpu_custom_call.1} parent=1 // pred_check
      %p103 = pneg %p57
    $region23: #{tpu_custom_call.1} parent=1 // pred_check_branch
      %105 = sbr.rel (%p103) target = $region25
    $region24: #{tpu_custom_call.1} parent=1 // pred_region
      %v106 = vld [vmem:[#allocation2] sm:$0xff]
      %107 = vst.msk [vmem:[%s2] sm:$0xff] %vm93, %v106
      %v108 = vld [vmem:[#allocation3] sm:$0xff]
      %109 = vst.msk [vmem:[%s3] sm:$0xff] %vm93, %v108
    $region25: #{tpu_custom_call.1} parent=1 // pred_fallthru
      _
    // Predicated region
    $region26: #{tpu_custom_call.1} parent=1 // pred_check
      _
    $region27: #{tpu_custom_call.1} parent=1 // pred_check_branch
      %111 = sbr.rel (0) target = $region29
    $region28: #{tpu_custom_call.1} parent=1 // pred_region
      _
    $region29: #{tpu_custom_call.1} parent=1 // pred_fallthru
      _
    // Predicated region
    $region30: #{tpu_custom_call.1} parent=1 // pred_check
      _
    $region31: #{tpu_custom_call.1} parent=1 // pred_check_branch
      %113 = sbr.rel (0) target = $region33
    $region32: #{tpu_custom_call.1} parent=1 // pred_region
      _
    $region33: #{tpu_custom_call.1} parent=1 // pred_fallthru
      _
    // Predicated region
    $region34: #{tpu_custom_call.1} parent=1 // pred_check
      _
    $region35: #{tpu_custom_call.1} parent=1 // pred_check_branch
      %115 = sbr.rel (0) target = $region37
    $region36: #{tpu_custom_call.1} parent=1 // pred_region
      _
    $region37: #{tpu_custom_call.1} parent=1 // pred_fallthru
      _
    // Predicated region
    $region38: #{tpu_custom_call.1} parent=1 // pred_check
      _
    $region39: #{tpu_custom_call.1} parent=1 // pred_check_branch
      %117 = sbr.rel (0) target = $region41
    $region40: #{tpu_custom_call.1} parent=1 // pred_region
      _
    $region41: #{tpu_custom_call.1} parent=1 // pred_fallthru
      _
    %118 = vsyncpa [#allocation5], 1
    %119 = vsyncpa [#allocation7], 1

</llo_original>
